<compile_context>
chip_gen: v5e
topology: v5e:2x2
jax: 0.10.0
libtpu: 0.0.40
codegen_flags: <defaults>
</compile_context>

<pallas_src>
import numpy as np
import jax
import jax.numpy as jnp
from jax import lax
from jax.experimental import pallas as pl
from jax.experimental.pallas import tpu as pltpu

_INPUT_DIM = 3
_INV_SQRT3 = float(1.0 / np.sqrt(_INPUT_DIM))
_LANES = 384            # lcm(3, 128): lane-dense AND group-aligned rows
_MAX_TILE_ROWS = 1024   # (1024, 384) f32 block = 1.5 MiB


def _soc_kernel(p_ref, x_ref, o_ref):
    """Fused SOC projection on an interleaved (rows, 384) block.

    Groups of 3 are contiguous along the lane axis.  Because 384 % 3 == 0,
    groups never straddle a row (or block) boundary, so the wrap-around lanes
    of the rolls are never selected by the phase masks.
    """
    t = p_ref[0]        # angle_tan
    inv_t = p_ref[1]    # 1 / angle_tan
    inv_den = p_ref[2]  # 1 / (angle_tan**2 + 1)

    x = x_ref[...]
    rows, lanes = x.shape

    lane = lax.broadcasted_iota(jnp.int32, (rows, lanes), 1)
    phase = lane % _INPUT_DIM
    is_p0 = phase == 0
    is_p2 = phase == 2

    # Lane rotations (positive shifts only): result[l] = x[(l - shift) % lanes]
    xm1 = pltpu.roll(x, 1, 1)            # x[l-1]
    xm2 = pltpu.roll(x, 2, 1)            # x[l-2]
    xp1 = pltpu.roll(x, lanes - 1, 1)    # x[l+1]
    xp2 = pltpu.roll(x, lanes - 2, 1)    # x[l+2]

    # The two other members of this lane's group of 3.
    a = jnp.where(is_p0, xp1, xm1)
    b = jnp.where(is_p0, xp2, jnp.where(is_p2, xm2, xp1))

    s = _INV_SQRT3 * (x + a + b)         # group sum / sqrt(3) (same for all 3 lanes)
    sc = s * _INV_SQRT3
    y = x - sc
    ya = a - sc
    yb = b - sc
    y_norm = jnp.sqrt(y * y + ya * ya + yb * yb)

    mask1 = jnp.logical_and(s * inv_t > -y_norm, s * t < y_norm)
    mask2 = y_norm <= s * t

    s1 = (s + y_norm * t) * inv_den
    coeff = s1 / (y_norm + 1e-9) * t     # exact divide keeps numerics tight
    proj = s1 * _INV_SQRT3 + coeff * y

    o_ref[...] = jnp.where(mask1, proj, jnp.where(mask2, x, jnp.zeros_like(x)))


def _round_up(a, b):
    return -(-a // b) * b


def soc_resnet_forward(x, angle_tan):
    """JAX/Pallas equivalent of soc_resnet.forward.

    x: (B, C, H, W) float32; angle_tan: scalar parameter.
    """
    B, C, H, W = x.shape
    r = W % _INPUT_DIM
    if r == 1:
        xp = jnp.pad(x, ((0, 0), (0, 0), (0, 0), (1, 1)))
    elif r == 2:
        xp = jnp.pad(x, ((0, 0), (0, 0), (0, 0), (0, 1)))
    else:
        # TODO(synk): PyTorch reference hits UnboundLocalError for W % 3 == 0;
        # we use x as-is (the natural intent).
        xp = x
    Wp = xp.shape[3]
    L = B * C * H * Wp                       # multiple of 3

    # Lane-dense 2-D view: rows of 384 lanes; groups of 3 stay contiguous.
    M = -(-L // _LANES)
    grid_n = max(1, -(-M // _MAX_TILE_ROWS))
    if grid_n == 1 and M > 16:
        grid_n = 2                           # give megacore chips >=2 blocks
    tile_rows = _round_up(-(-M // grid_n), 8)
    M_pad = _round_up(M, tile_rows)
    grid_n = M_pad // tile_rows
    Lp = M_pad * _LANES

    flat = xp.reshape(-1)
    if Lp != L:
        flat = jnp.pad(flat, (0, Lp - L))    # zero groups project to zero (harmless)
    x2d = flat.reshape(M_pad, _LANES)

    t = jnp.asarray(angle_tan, dtype=x.dtype).reshape(())
    params = jnp.stack([t, 1.0 / t, 1.0 / (t * t + 1.0)]).astype(x.dtype)

    spec = pl.BlockSpec((tile_rows, _LANES), lambda i: (i, 0))

    o2d = pl.pallas_call(
        _soc_kernel,
        grid=(grid_n,),
        in_specs=[
            pl.BlockSpec(memory_space=pltpu.MemorySpace.SMEM),  # [t, 1/t, 1/(t^2+1)]
            spec,
        ],
        out_specs=spec,
        out_shape=jax.ShapeDtypeStruct((M_pad, _LANES), x.dtype),
        compiler_params=pltpu.CompilerParams(
            dimension_semantics=("parallel",),
            vmem_limit_bytes=32 * 1024 * 1024,
        ),
    )(params, x2d)

    out = o2d.reshape(-1)[:L].reshape(B, C, H, Wp)
    if r == 1:
        out = out[:, :, :, 1:-1]
    elif r == 2:
        out = out[:, :, :, :-1]
    return out


def _soc_resnet_ref(x, angle_tan):
    """Pure-JAX reference mirroring the PyTorch forward (for verification)."""
    B, C, H, W = x.shape
    r = W % _INPUT_DIM
    if r == 1:
        xp = jnp.pad(x, ((0, 0), (0, 0), (0, 0), (1, 1)))
    elif r == 2:
        xp = jnp.pad(x, ((0, 0), (0, 0), (0, 0), (0, 1)))
    else:
        xp = x
    Wp = xp.shape[3]
    xr = xp.reshape(B, C, H, Wp // _INPUT_DIM, _INPUT_DIM)
    t = jnp.asarray(angle_tan, dtype=x.dtype)
    s = _INV_SQRT3 * jnp.sum(xr, axis=4)
    y = xr - s[..., None] * _INV_SQRT3
    y_norm = jnp.linalg.norm(y, 2, axis=4)
    mask1 = jnp.logical_and(s / t > -y_norm, s * t < y_norm)[..., None]
    mask2 = (y_norm <= s * t)[..., None]
    s1 = (s + y_norm * t) / (t * t + 1.0)
    coeff = s1 / (y_norm + 1e-9) * t
    y1 = coeff[..., None] * y
    x_result = s1[..., None] * _INV_SQRT3 + y1
    x_result2 = mask1 * x_result + mask2 * xr
    out = x_result2.reshape(B, C, H, Wp)
    if r == 1:
        out = out[:, :, :, 1:-1]
    elif r == 2:
        out = out[:, :, :, :-1]
    return out


if __name__ == "__main__":
    key = jax.random.PRNGKey(0)
    # Small shapes: B=2, C=4, H=16, W=16  (W % 3 == 1 -> pad both sides).
    x = jax.random.normal(key, (2, 4, 16, 16), dtype=jnp.float32)
    # Deterministic parameter init: angle_tan = tan(pi/6).
    angle_tan = float(np.tan(np.pi / 6.0))

    fwd = jax.jit(soc_resnet_forward)
    out = jax.block_until_ready(fwd(x, angle_tan))

    ref = jax.block_until_ready(_soc_resnet_ref(x, angle_tan))
    assert out.shape == x.shape, (out.shape, x.shape)
    assert jnp.allclose(out, ref, atol=1e-5, rtol=1e-5), "mismatch vs reference"

    print("KERNEL_OK")
</pallas_src>

<mosaic_0001>
module attributes {stable_mosaic.version = 11 : i64} {
  func.func @_soc_kernel(%arg0: i32, %arg1: memref<3xf32, #tpu.memory_space<smem>>, %arg2: memref<8x384xf32, #tpu.memory_space<vmem>>, %arg3: memref<8x384xf32, #tpu.memory_space<vmem>>) attributes {dimension_semantics = [#tpu.dimension_semantics<parallel>], iteration_bounds = array<i64: 1>, scalar_prefetch = 0 : i64, scratch_operands = 0 : i64, tpu.core_type = #tpu.core_type<tc>, window_params = [{transform_indices = @transform_0, window_bounds = array<i64: 3>}, {transform_indices = @transform_1, window_bounds = array<i64: 8, 384>}, {transform_indices = @transform_2, window_bounds = array<i64: 8, 384>}]} {
    %c0 = arith.constant 0 : index
    %0 = memref.load %arg1[%c0] : memref<3xf32, #tpu.memory_space<smem>>
    %c1 = arith.constant 1 : index
    %1 = memref.load %arg1[%c1] : memref<3xf32, #tpu.memory_space<smem>>
    %c2 = arith.constant 2 : index
    %2 = memref.load %arg1[%c2] : memref<3xf32, #tpu.memory_space<smem>>
    %c0_0 = arith.constant 0 : index
    %c0_1 = arith.constant 0 : index
    %3 = vector.load %arg2[%c0_0, %c0_1] : memref<8x384xf32, #tpu.memory_space<vmem>>, vector<8x384xf32>
    %4 = tpu.iota {dimensions = array<i32: 1>} : vector<8x384xi32>
    %c3_i32 = arith.constant 3 : i32
    %c0_i32 = arith.constant 0 : i32
    %5 = arith.cmpi eq, %c3_i32, %c0_i32 : i32
    %c1_i32 = arith.constant 1 : i32
    %6 = arith.select %5, %c1_i32, %c3_i32 : i32
    %7 = vector.broadcast %6 : i32 to vector<8x384xi32>
    %8 = arith.remsi %4, %7 : vector<8x384xi32>
    %c0_i32_2 = arith.constant 0 : i32
    %9 = vector.broadcast %c0_i32_2 : i32 to vector<8x384xi32>
    %10 = arith.cmpi ne, %8, %9 : vector<8x384xi32>
    %c0_i32_3 = arith.constant 0 : i32
    %11 = vector.broadcast %c0_i32_3 : i32 to vector<8x384xi32>
    %12 = arith.cmpi slt, %8, %11 : vector<8x384xi32>
    %c0_i32_4 = arith.constant 0 : i32
    %13 = arith.cmpi slt, %6, %c0_i32_4 : i32
    %14 = vector.broadcast %13 : i1 to vector<8x384xi1>
    %15 = vector.broadcast %14 : vector<8x384xi1> to vector<8x384xi1>
    %16 = arith.xori %12, %15 : vector<8x384xi1>
    %17 = arith.andi %16, %10 : vector<8x384xi1>
    %18 = vector.broadcast %6 : i32 to vector<8x384xi32>
    %19 = arith.addi %8, %18 : vector<8x384xi32>
    %20 = arith.select %17, %19, %8 : vector<8x384xi1>, vector<8x384xi32>
    %c0_i32_5 = arith.constant 0 : i32
    %21 = vector.broadcast %c0_i32_5 : i32 to vector<8x384xi32>
    %22 = arith.cmpi eq, %20, %21 : vector<8x384xi32>
    %c2_i32 = arith.constant 2 : i32
    %23 = vector.broadcast %c2_i32 : i32 to vector<8x384xi32>
    %24 = arith.cmpi eq, %20, %23 : vector<8x384xi32>
    %c1_i32_6 = arith.constant 1 : i32
    %25 = tpu.dynamic_rotate %3 by %c1_i32_6 dim 1 : vector<8x384xf32>, i32 -> vector<8x384xf32>
    %c2_i32_7 = arith.constant 2 : i32
    %26 = tpu.dynamic_rotate %3 by %c2_i32_7 dim 1 : vector<8x384xf32>, i32 -> vector<8x384xf32>
    %c383_i32 = arith.constant 383 : i32
    %27 = tpu.dynamic_rotate %3 by %c383_i32 dim 1 : vector<8x384xf32>, i32 -> vector<8x384xf32>
    %c382_i32 = arith.constant 382 : i32
    %28 = tpu.dynamic_rotate %3 by %c382_i32 dim 1 : vector<8x384xf32>, i32 -> vector<8x384xf32>
    %29 = arith.select %22, %27, %25 : vector<8x384xi1>, vector<8x384xf32>
    %30 = arith.select %24, %26, %27 : vector<8x384xi1>, vector<8x384xf32>
    %31 = arith.select %22, %28, %30 : vector<8x384xi1>, vector<8x384xf32>
    %32 = arith.addf %3, %29 : vector<8x384xf32>
    %33 = arith.addf %32, %31 : vector<8x384xf32>
    %cst = arith.constant 0.577350259 : f32
    %34 = vector.broadcast %cst : f32 to vector<8x384xf32>
    %35 = arith.mulf %34, %33 : vector<8x384xf32>
    %cst_8 = arith.constant 0.577350259 : f32
    %36 = vector.broadcast %cst_8 : f32 to vector<8x384xf32>
    %37 = arith.mulf %35, %36 : vector<8x384xf32>
    %38 = arith.subf %3, %37 : vector<8x384xf32>
    %39 = arith.subf %29, %37 : vector<8x384xf32>
    %40 = arith.subf %31, %37 : vector<8x384xf32>
    %41 = arith.mulf %38, %38 : vector<8x384xf32>
    %42 = arith.mulf %39, %39 : vector<8x384xf32>
    %43 = arith.addf %41, %42 : vector<8x384xf32>
    %44 = arith.mulf %40, %40 : vector<8x384xf32>
    %45 = arith.addf %43, %44 : vector<8x384xf32>
    %46 = math.sqrt %45 : vector<8x384xf32>
    %47 = vector.broadcast %1 : f32 to vector<8x384xf32>
    %48 = arith.mulf %35, %47 : vector<8x384xf32>
    %cst_9 = arith.constant 0.000000e+00 : f32
    %49 = vector.broadcast %cst_9 : f32 to vector<8x384xf32>
    %50 = arith.subf %49, %46 : vector<8x384xf32>
    %51 = arith.cmpf ogt, %48, %50 : vector<8x384xf32>
    %52 = vector.broadcast %0 : f32 to vector<8x384xf32>
    %53 = arith.mulf %35, %52 : vector<8x384xf32>
    %54 = arith.cmpf olt, %53, %46 : vector<8x384xf32>
    %55 = arith.andi %51, %54 : vector<8x384xi1>
    %56 = vector.broadcast %0 : f32 to vector<8x384xf32>
    %57 = arith.mulf %35, %56 : vector<8x384xf32>
    %58 = arith.cmpf ole, %46, %57 : vector<8x384xf32>
    %59 = vector.broadcast %0 : f32 to vector<8x384xf32>
    %60 = arith.mulf %46, %59 : vector<8x384xf32>
    %61 = arith.addf %35, %60 : vector<8x384xf32>
    %62 = vector.broadcast %2 : f32 to vector<8x384xf32>
    %63 = arith.mulf %61, %62 : vector<8x384xf32>
    %cst_10 = arith.constant 9.99999971E-10 : f32
    %64 = vector.broadcast %cst_10 : f32 to vector<8x384xf32>
    %65 = arith.addf %46, %64 : vector<8x384xf32>
    %66 = arith.divf %63, %65 : vector<8x384xf32>
    %67 = vector.broadcast %0 : f32 to vector<8x384xf32>
    %68 = arith.mulf %66, %67 : vector<8x384xf32>
    %cst_11 = arith.constant 0.577350259 : f32
    %69 = vector.broadcast %cst_11 : f32 to vector<8x384xf32>
    %70 = arith.mulf %63, %69 : vector<8x384xf32>
    %71 = arith.mulf %68, %38 : vector<8x384xf32>
    %72 = arith.addf %70, %71 : vector<8x384xf32>
    %cst_12 = arith.constant 0.000000e+00 : f32
    %73 = vector.broadcast %cst_12 : f32 to vector<8x384xf32>
    %74 = arith.select %58, %3, %73 : vector<8x384xi1>, vector<8x384xf32>
    %75 = arith.select %55, %72, %74 : vector<8x384xi1>, vector<8x384xf32>
    %c0_13 = arith.constant 0 : index
    %c0_14 = arith.constant 0 : index
    %76 = vector.load %arg3[%c0_13, %c0_14] : memref<8x384xf32, #tpu.memory_space<vmem>>, vector<8x384xf32>
    tpu.vector_store %arg3[%c0_13, %c0_14], %75 {strides = array<i32>} : memref<8x384xf32, #tpu.memory_space<vmem>>, vector<8x384xf32>,
    return
  }
  func.func @transform_0(%arg0: i32) -> i32 {
    %c0_i32 = arith.constant 0 : i32
    %c0_i32_0 = arith.constant 0 : i32
    return %c0_i32 : i32
  }
  func.func @transform_1(%arg0: i32) -> (i32, i32) {
    %c0_i32 = arith.constant 0 : i32
    %c0_i32_0 = arith.constant 0 : i32
    return %arg0, %c0_i32 : i32, i32
  }
  func.func @transform_2(%arg0: i32) -> (i32, i32) {
    %c0_i32 = arith.constant 0 : i32
    %c0_i32_0 = arith.constant 0 : i32
    return %arg0, %c0_i32 : i32, i32
  }
}

</mosaic_0001>

<llo_original>
// kernel: soc_resnet_forward.1
$region0: #{soc_resnet_forward.1}
  #allocation0 [shape = 'u32[]', space=smem, size = 0x4, offset = 0x4, fixed_abs, tag = 'smem constant byte address 0x4 - core index']
  #allocation1 [shape = 'u32[72,128]{1,0:T(1,128)}', space=vmem, size = 0x9000, scoped, tag = 'internal scratch']
  %s0 = inlined_call_operand.vmem [shape: f32[3], index: 0, kind: input, shape index: {}]
  %s1 = inlined_call_operand.vmem [shape: f32[8,384], index: 1, kind: input, shape index: {}]
  %s2 = inlined_call_operand.vmem [shape: f32[8,384], index: 2, kind: output, shape index: {}]
  %s3 = sld [smem:[#allocation0]]
  $region22: #{soc_resnet_forward.1} parent=0
    _
  %s5 = ssub.s32 1, %s3
  %s6 = scalar_select 0, %s5, %s3
  $region1: #{soc_resnet_forward.1} parent=0
    #allocation2 [shape = 'u8[512]{0}', space=smem, size = 0x200, scoped, tag = 'input window, operand 0, single buffered']
    #allocation3 [shape = 's32[1]{0}', space=sflag, size = 0x4, scoped, tag = 'scoped memory for soc_resnet_forward.1']
    %7 = vsyncpa [#allocation3], 0
    // Predicated region
    $region2: #{soc_resnet_forward.1} parent=1 // pred_check
      _
    $region3: #{soc_resnet_forward.1} parent=1 // pred_check_branch
      %9 = sbr.rel (0) target = $region5
    $region4: #{soc_resnet_forward.1} parent=1 // pred_region
      %11 = vsyncadd [#allocation3], 0
      %s13 = sshll.u32 %s0, 4
      %s14 = int_to_ptr.vmem [resolvable:$true] %s13
      %16 = dma.vmem_to_smem %s14, 16, [#allocation2], [#allocation3]
    $region5: #{soc_resnet_forward.1} parent=1 // pred_fallthru
      _
    // Predicated region
    $region6: #{soc_resnet_forward.1} parent=1 // pred_check
      _
    $region7: #{soc_resnet_forward.1} parent=1 // pred_check_branch
      %18 = sbr.rel (0) target = $region9
    $region8: #{soc_resnet_forward.1} parent=1 // pred_region
      _
    $region9: #{soc_resnet_forward.1} parent=1 // pred_fallthru
      _
    // Predicated region
    $region10: #{soc_resnet_forward.1} parent=1 // pred_check
      _
    $region11: #{soc_resnet_forward.1} parent=1 // pred_check_branch
      %20 = sbr.rel (0) target = $region13
    $region12: #{soc_resnet_forward.1} parent=1 // pred_region
      %22 = dma.done [#allocation3], 16
    $region13: #{soc_resnet_forward.1} parent=1 // pred_fallthru
      _
    %23 = sfence
    %s24 = sld [smem:[#allocation2]]
    %s25 = sld [smem:[#allocation2 + $0x1]]
    %s26 = sld [smem:[#allocation2 + $0x2]]
    %v27 = vld [vmem:[%s1] sm:$0xff]
    %v28 = vld [vmem:[%s1 + $0x8] sm:$0xff]
    %v29 = vld [vmem:[%s1 + $0x10] sm:$0xff]
    %v30 = vlaneseq
    %v31 = vand.u32 %v30, 127
    %v32 = vadd.s32 %v31, 128
    %v33 = vadd.s32 %v31, 256
    %vm34 = vcmp.lt.s32.totalorder %v31, 0
    %v35 = vsub.s32 0, %v31
    %v36 = vsel %vm34, %v35, %v31
    %v37 = vand.u32 %v36, 65535
    %v38 = vshrl.u32 %v36, 16
    %v40 = vmul.u32 %v37, 43691
    %v41 = vmul.u32 %v37, 43690
    %v42 = vmul.u32 %v38, 43691
    %v43 = vmul.u32 %v38, 43690
    %v44 = vshll.u32 %v41, 16
    %v45 = vshrl.u32 %v41, 16
    %v46 = vshll.u32 %v42, 16
    %v47 = vshrl.u32 %v42, 16
    %vm48 = vc.u32 %v40, %v44
    %v49 = vsel %vm48, 1, 0
    %v50 = vadd.s32 %v40, %v44
    %v51 = vadd.s32 %v43, %v49
    %vm52 = vc.u32 %v50, %v46
    %v53 = vsel %vm52, 1, 0
    %v54 = vadd.s32 %v50, %v46
    %v55 = vadd.s32 %v51, %v53
    %v56 = vadd.s32 %v55, %v45
    %v57 = vadd.s32 %v56, %v47
    %v58 = vshrl.u32 %v57, 1
    %v59 = vmul.u32 %v58, 3
    %v60 = vsub.s32 %v36, %v59
    %v61 = vsub.s32 0, %v60
    %v62 = vsel %vm34, %v61, %v60
    %vm63 = vcmp.lt.s32.totalorder %v32, 0
    %v64 = vsub.s32 0, %v32
    %v65 = vsel %vm63, %v64, %v32
    %v66 = vand.u32 %v65, 65535
    %v67 = vshrl.u32 %v65, 16
    %v69 = vmul.u32 %v66, 43691
    %v70 = vmul.u32 %v66, 43690
    %v71 = vmul.u32 %v67, 43691
    %v72 = vmul.u32 %v67, 43690
    %v73 = vshll.u32 %v70, 16
    %v74 = vshrl.u32 %v70, 16
    %v75 = vshll.u32 %v71, 16
    %v76 = vshrl.u32 %v71, 16
    %vm77 = vc.u32 %v69, %v73
    %v78 = vsel %vm77, 1, 0
    %v79 = vadd.s32 %v69, %v73
    %v80 = vadd.s32 %v72, %v78
    %vm81 = vc.u32 %v79, %v75
    %v82 = vsel %vm81, 1, 0
    %v83 = vadd.s32 %v79, %v75
    %v84 = vadd.s32 %v80, %v82
    %v85 = vadd.s32 %v84, %v74
    %v86 = vadd.s32 %v85, %v76
    %v87 = vshrl.u32 %v86, 1
    %v88 = vmul.u32 %v87, 3
    %v89 = vsub.s32 %v65, %v88
    %v90 = vsub.s32 0, %v89
    %v91 = vsel %vm63, %v90, %v89
    %vm92 = vcmp.lt.s32.totalorder %v33, 0
    %v93 = vsub.s32 0, %v33
    %v94 = vsel %vm92, %v93, %v33
    %v95 = vand.u32 %v94, 65535
    %v96 = vshrl.u32 %v94, 16
    %v98 = vmul.u32 %v95, 43691
    %v99 = vmul.u32 %v95, 43690
    %v100 = vmul.u32 %v96, 43691
    %v101 = vmul.u32 %v96, 43690
    %v102 = vshll.u32 %v99, 16
    %v103 = vshrl.u32 %v99, 16
    %v104 = vshll.u32 %v100, 16
    %v105 = vshrl.u32 %v100, 16
    %vm106 = vc.u32 %v98, %v102
    %v107 = vsel %vm106, 1, 0
    %v108 = vadd.s32 %v98, %v102
    %v109 = vadd.s32 %v101, %v107
    %vm110 = vc.u32 %v108, %v104
    %v111 = vsel %vm110, 1, 0
    %v112 = vadd.s32 %v108, %v104
    %v113 = vadd.s32 %v109, %v111
    %v114 = vadd.s32 %v113, %v103
    %v115 = vadd.s32 %v114, %v105
    %v116 = vshrl.u32 %v115, 1
    %v117 = vmul.u32 %v116, 3
    %v118 = vsub.s32 %v94, %v117
    %v119 = vsub.s32 0, %v118
    %v120 = vsel %vm92, %v119, %v118
    %vm121 = vcmp.ne.s32.totalorder %v62, 0
    %vm122 = vcmp.ne.s32.totalorder %v91, 0
    %vm123 = vcmp.ne.s32.totalorder %v120, 0
    %vm124 = vcmp.lt.s32.totalorder %v62, 0
    %vm125 = vcmp.lt.s32.totalorder %v91, 0
    %vm126 = vcmp.lt.s32.totalorder %v120, 0
    %vm127 = vmand %vm124, %vm121
    %vm128 = vmand %vm125, %vm122
    %vm129 = vmand %vm126, %vm123
    %v130 = vadd.s32 %v62, 3
    %v131 = vadd.s32 %v91, 3
    %v132 = vadd.s32 %v120, 3
    %v133 = vsel %vm127, %v130, %v62
    %v134 = vsel %vm128, %v131, %v91
    %v135 = vsel %vm129, %v132, %v120
    %vm136 = vcmp.eq.s32.totalorder %v133, 0
    %vm137 = vcmp.eq.s32.totalorder %v134, 0
    %vm138 = vcmp.eq.s32.totalorder %v135, 0
    %vm139 = vcmp.eq.s32.totalorder %v133, 2
    %vm140 = vcmp.eq.s32.totalorder %v134, 2
    %vm141 = vcmp.eq.s32.totalorder %v135, 2
    %142 = vrot.lane.b32.xlu0 %v27, 1
    %v143 = vpop.permute.xlu0 %142
    %144 = vrot.lane.b32.xlu0 %v28, 1
    %v145 = vpop.permute.xlu0 %144
    %146 = vrot.lane.b32.xlu0 %v29, 1
    %v147 = vpop.permute.xlu0 %146
    %vm148 = vcmp.lt.s32.totalorder %v31, 1
    %v149 = vsel %vm148, %v145, %v147
    %v150 = vsel %vm148, %v143, %v145
    %v151 = vsel %vm148, %v147, %v143
    %152 = vrot.lane.b32.xlu0 %v27, 2
    %v153 = vpop.permute.xlu0 %152
    %154 = vrot.lane.b32.xlu0 %v28, 2
    %v155 = vpop.permute.xlu0 %154
    %156 = vrot.lane.b32.xlu0 %v29, 2
    %v157 = vpop.permute.xlu0 %156
    %vm158 = vcmp.lt.s32.totalorder %v31, 2
    %v159 = vsel %vm158, %v155, %v157
    %v160 = vsel %vm158, %v153, %v155
    %v161 = vsel %vm158, %v157, %v153
    %162 = vrot.lane.b32.xlu0 %v27, 127
    %v163 = vpop.permute.xlu0 %162
    %164 = vrot.lane.b32.xlu0 %v28, 127
    %v165 = vpop.permute.xlu0 %164
    %166 = vrot.lane.b32.xlu0 %v29, 127
    %v167 = vpop.permute.xlu0 %166
    %vm168 = vcmp.lt.s32.totalorder %v31, 127
    %v169 = vsel %vm168, %v165, %v167
    %v170 = vsel %vm168, %v163, %v165
    %v171 = vsel %vm168, %v167, %v163
    %172 = vrot.lane.b32.xlu0 %v27, 126
    %v173 = vpop.permute.xlu0 %172
    %174 = vrot.lane.b32.xlu0 %v28, 126
    %v175 = vpop.permute.xlu0 %174
    %176 = vrot.lane.b32.xlu0 %v29, 126
    %v177 = vpop.permute.xlu0 %176
    %vm178 = vcmp.lt.s32.totalorder %v31, 126
    %v179 = vsel %vm178, %v175, %v177
    %v180 = vsel %vm178, %v173, %v175
    %v181 = vsel %vm178, %v177, %v173
    %v182 = vsel %vm136, %v170, %v151
    %v183 = vsel %vm137, %v169, %v150
    %v184 = vsel %vm138, %v171, %v149
    %v185 = vsel %vm139, %v161, %v170
    %v186 = vsel %vm140, %v160, %v169
    %v187 = vsel %vm141, %v159, %v171
    %v188 = vsel %vm136, %v180, %v185
    %v189 = vsel %vm137, %v179, %v186
    %v190 = vsel %vm138, %v181, %v187
    %v191 = vadd.f32 %v27, %v182
    %v192 = vadd.f32 %v28, %v183
    %v193 = vadd.f32 %v29, %v184
    %v194 = vadd.f32 %v191, %v188
    %v195 = vadd.f32 %v192, %v189
    %v196 = vadd.f32 %v193, %v190
    %v197 = vmul.f32 %v194, 0.57735026
    %v198 = vmul.f32 %v195, 0.57735026
    %v199 = vmul.f32 %v196, 0.57735026
    %v200 = vmul.f32 %v197, 0.57735026
    %v201 = vmul.f32 %v198, 0.57735026
    %v202 = vmul.f32 %v199, 0.57735026
    %v203 = vsub.f32 %v27, %v200
    %v204 = vsub.f32 %v28, %v201
    %v205 = vsub.f32 %v29, %v202
    %v206 = vsub.f32 %v182, %v200
    %v207 = vsub.f32 %v183, %v201
    %v208 = vsub.f32 %v184, %v202
    %v209 = vsub.f32 %v188, %v200
    %v210 = vsub.f32 %v189, %v201
    %v211 = vsub.f32 %v190, %v202
    %v212 = vmul.f32 %v203, %v203
    %v213 = vmul.f32 %v204, %v204
    %v214 = vmul.f32 %v205, %v205
    %v215 = vmul.f32 %v206, %v206
    %v216 = vmul.f32 %v207, %v207
    %v217 = vmul.f32 %v208, %v208
    %v218 = vadd.f32 %v212, %v215
    %v219 = vadd.f32 %v213, %v216
    %v220 = vadd.f32 %v214, %v217
    %v221 = vmul.f32 %v209, %v209
    %v222 = vmul.f32 %v210, %v210
    %v223 = vmul.f32 %v211, %v211
    %v224 = vadd.f32 %v218, %v221
    %v225 = vadd.f32 %v219, %v222
    %v226 = vadd.f32 %v220, %v223
    %v227 = vrsqrt.pop %v224
    %v228 = vmul.f32 %v227, %v224
    %v229 = vmul.f32 %v228, %v227
    %v230 = vmul.f32 0.5, %v229
    %v231 = vsub.f32 1.5, %v230
    %v232 = vmul.f32 %v227, %v231
    %v233 = vmul.f32 %v224, %v232
    %vm234 = vcmp.eq.f32.partialorder %v224, inf
    %v235 = vsel %vm234, %v224, %v233
    %vm236 = vcmp.eq.f32.partialorder %v224, 0.0
    %v237 = vand.u32 %v224, 2147483648
    %v238 = vsel %vm236, %v237, %v235
    %v239 = vrsqrt.pop %v225
    %v240 = vmul.f32 %v239, %v225
    %v241 = vmul.f32 %v240, %v239
    %v242 = vmul.f32 0.5, %v241
    %v243 = vsub.f32 1.5, %v242
    %v244 = vmul.f32 %v239, %v243
    %v245 = vmul.f32 %v225, %v244
    %vm246 = vcmp.eq.f32.partialorder %v225, inf
    %v247 = vsel %vm246, %v225, %v245
    %vm248 = vcmp.eq.f32.partialorder %v225, 0.0
    %v249 = vand.u32 %v225, 2147483648
    %v250 = vsel %vm248, %v249, %v247
    %v251 = vrsqrt.pop %v226
    %v252 = vmul.f32 %v251, %v226
    %v253 = vmul.f32 %v252, %v251
    %v254 = vmul.f32 0.5, %v253
    %v255 = vsub.f32 1.5, %v254
    %v256 = vmul.f32 %v251, %v255
    %v257 = vmul.f32 %v226, %v256
    %vm258 = vcmp.eq.f32.partialorder %v226, inf
    %v259 = vsel %vm258, %v226, %v257
    %vm260 = vcmp.eq.f32.partialorder %v226, 0.0
    %v261 = vand.u32 %v226, 2147483648
    %v262 = vsel %vm260, %v261, %v259
    %v263 = vstv %s25
    %v264 = vmul.f32 %v197, %v263
    %v265 = vmul.f32 %v198, %v263
    %v266 = vmul.f32 %v199, %v263
    %v267 = vsub.f32 0.0, %v238
    %v268 = vsub.f32 0.0, %v250
    %v269 = vsub.f32 0.0, %v262
    %vm270 = vcmp.gt.f32.partialorder %v264, %v267
    %vm271 = vcmp.gt.f32.partialorder %v265, %v268
    %vm272 = vcmp.gt.f32.partialorder %v266, %v269
    %v273 = vstv %s24
    %v274 = vmul.f32 %v197, %v273
    %v275 = vmul.f32 %v198, %v273
    %v276 = vmul.f32 %v199, %v273
    %vm277 = vcmp.lt.f32.partialorder %v274, %v238
    %vm278 = vcmp.lt.f32.partialorder %v275, %v250
    %vm279 = vcmp.lt.f32.partialorder %v276, %v262
    %vm280 = vmand %vm270, %vm277
    %vm281 = vmand %vm271, %vm278
    %vm282 = vmand %vm272, %vm279
    %vm283 = vcmp.le.f32.partialorder %v238, %v274
    %vm284 = vcmp.le.f32.partialorder %v250, %v275
    %vm285 = vcmp.le.f32.partialorder %v262, %v276
    %v286 = vmul.f32 %v238, %v273
    %v287 = vmul.f32 %v250, %v273
    %v288 = vmul.f32 %v262, %v273
    %v289 = vadd.f32 %v197, %v286
    %v290 = vadd.f32 %v198, %v287
    %v291 = vadd.f32 %v199, %v288
    %v292 = vstv %s26
    %v293 = vmul.f32 %v289, %v292
    %v294 = vmul.f32 %v290, %v292
    %v295 = vmul.f32 %v291, %v292
    %v296 = vadd.f32 %v238, 1e-09
    %v297 = vadd.f32 %v250, 1e-09
    %v298 = vadd.f32 %v262, 1e-09
    %v299 = vrcp.pop %v296
    %v300 = vmul.f32 %v296, %v299
    %v301 = vsub.f32 1.0, %v300
    %v302 = vmul.f32 %v299, %v301
    %v303 = vadd.f32 %v299, %v302
    %vm304 = vweird.f32 %v296
    %vm305 = vweird.f32 %v299
    %vm306 = vmor %vm304, %vm305
    %v307 = vsel %vm306, %v299, %v303
    %v308 = vand.u32 2147483647, %v296
    %vm309 = vcmp.eq.f32.partialorder %v308, 8.507059e+37
    %v310 = vand.u32 %v296, 2147483648
    %v311 = vor.u32 1.1754944e-38, %v310
    %v312 = vsel %vm309, %v311, %v307
    %v313 = vmul.f32 %v293, %v312
    %v314 = vrcp.pop %v297
    %v315 = vmul.f32 %v297, %v314
    %v316 = vsub.f32 1.0, %v315
    %v317 = vmul.f32 %v314, %v316
    %v318 = vadd.f32 %v314, %v317
    %vm319 = vweird.f32 %v297
    %vm320 = vweird.f32 %v314
    %vm321 = vmor %vm319, %vm320
    %v322 = vsel %vm321, %v314, %v318
    %v323 = vand.u32 2147483647, %v297
    %vm324 = vcmp.eq.f32.partialorder %v323, 8.507059e+37
    %v325 = vand.u32 %v297, 2147483648
    %v326 = vor.u32 1.1754944e-38, %v325
    %v327 = vsel %vm324, %v326, %v322
    %v328 = vmul.f32 %v294, %v327
    %v329 = vrcp.pop %v298
    %v330 = vmul.f32 %v298, %v329
    %v331 = vsub.f32 1.0, %v330
    %v332 = vmul.f32 %v329, %v331
    %v333 = vadd.f32 %v329, %v332
    %vm334 = vweird.f32 %v298
    %vm335 = vweird.f32 %v329
    %vm336 = vmor %vm334, %vm335
    %v337 = vsel %vm336, %v329, %v333
    %v338 = vand.u32 2147483647, %v298
    %vm339 = vcmp.eq.f32.partialorder %v338, 8.507059e+37
    %v340 = vand.u32 %v298, 2147483648
    %v341 = vor.u32 1.1754944e-38, %v340
    %v342 = vsel %vm339, %v341, %v337
    %v343 = vmul.f32 %v295, %v342
    %v344 = vmul.f32 %v313, %v273
    %v345 = vmul.f32 %v328, %v273
    %v346 = vmul.f32 %v343, %v273
    %v347 = vmul.f32 %v293, 0.57735026
    %v348 = vmul.f32 %v294, 0.57735026
    %v349 = vmul.f32 %v295, 0.57735026
    %v350 = vmul.f32 %v344, %v203
    %v351 = vmul.f32 %v345, %v204
    %v352 = vmul.f32 %v346, %v205
    %v353 = vadd.f32 %v347, %v350
    %v354 = vadd.f32 %v348, %v351
    %v355 = vadd.f32 %v349, %v352
    %v356 = vsel %vm283, %v27, 0.0
    %v357 = vsel %vm284, %v28, 0.0
    %v358 = vsel %vm285, %v29, 0.0
    %v359 = vsel %vm280, %v353, %v356
    %v360 = vsel %vm281, %v354, %v357
    %v361 = vsel %vm282, %v355, %v358
    %362 = vst [vmem:[%s2] sm:$0xff] %v359
    %363 = vst [vmem:[%s2 + $0x8] sm:$0xff] %v360
    %364 = vst [vmem:[%s2 + $0x10] sm:$0xff] %v361
    // Predicated region
    $region14: #{soc_resnet_forward.1} parent=1 // pred_check
      _
    $region15: #{soc_resnet_forward.1} parent=1 // pred_check_branch
      %366 = sbr.rel (0) target = $region17
    $region16: #{soc_resnet_forward.1} parent=1 // pred_region
      _
    $region17: #{soc_resnet_forward.1} parent=1 // pred_fallthru
      _
    // Predicated region
    $region18: #{soc_resnet_forward.1} parent=1 // pred_check
      _
    $region19: #{soc_resnet_forward.1} parent=1 // pred_check_branch
      %368 = sbr.rel (0) target = $region21
    $region20: #{soc_resnet_forward.1} parent=1 // pred_region
      _
    $region21: #{soc_resnet_forward.1} parent=1 // pred_fallthru
      _
    %369 = vsyncpa [#allocation3], 1

</llo_original>
